<compile_context>
chip_gen: v6e
topology: v6e:2x2x1
jax: 0.10.0
libtpu: 0.0.40
codegen_flags: <defaults>
</compile_context>

<pallas_src>
from functools import partial

import jax
import jax.numpy as jnp
from jax.experimental import pallas as pl
from jax.experimental.pallas import tpu as pltpu


def _convbnact_kernel(x_ref, p_ref, o_ref, *, cin, cout, nexp):
    """Fused DynamicConv(1x1) + folded-BN + ReLU for one batch tile.

    x_ref: (Bblk*Cin, HW)  input rows (batch-major, channel-minor), HW on lanes
    p_ref: (Cin*Cout + Cin + 1 + Cout, E) packed parameters:
             rows [0, Cin*Cout)          : we_all[ci*Cout+co, e] = we[e,co,ci]*bn_scale[co]
             rows [Cin*Cout, +Cin)       : wr_T[ci, e]           = routing weight
             row   Cin*Cout+Cin          : br[e]                 = routing bias
             rows  last Cout, lane 0     : folded BN bias column
    o_ref: (Bblk*Cout, HW) output rows
    """
    rows, hw = x_ref.shape
    bblk = rows // cin
    cc = cin * cout

    p = p_ref[...]
    we_all = p[0:cc, 0:nexp]                      # (Cin*Cout, E)
    wr_t = p[cc:cc + cin, 0:nexp]                 # (Cin, E)
    br_row = p[cc + cin:cc + cin + 1, 0:nexp]     # (1, E)
    b0 = cc + cin + 1
    bias_col = p[b0:b0 + cout, 0:1]               # (Cout, 1) = beta - mean*gamma/sqrt(var+eps)

    x = x_ref[...]                                # (Bblk*Cin, HW)

    # F.adaptive_avg_pool2d(x, 1).flatten(1): per-row lane reduce (fully packed sublanes).
    pooled = jnp.mean(x, axis=-1, keepdims=True)  # (Bblk*Cin, 1)

    # Hoisted once: folded BN bias broadcast along lanes (shared by every batch sample).
    bias_init = jnp.broadcast_to(bias_col, (cout, hw))

    for b in range(bblk):                         # static unroll over the batch tile
        # routing = sigmoid(Linear(pooled_b)) -- computed directly as a (1, E) lane row.
        pb = pooled[b * cin:(b + 1) * cin, :]                              # (Cin, 1)
        logits = jnp.sum(pb * wr_t, axis=0, keepdims=True)                 # (1, E)
        routing = jax.nn.sigmoid(logits + br_row)                          # (1, E), EUP

        acc = bias_init                                                    # (Cout, HW) f32
        for ci in range(cin):                     # static unroll, Cin=4
            # Mixed (BN-scaled) weight column for this input channel: (Cout, 1).
            w_col = jnp.sum(we_all[ci * cout:(ci + 1) * cout, :] * routing,
                            axis=-1, keepdims=True)
            # 1x1 conv MAC on the VPU: (Cout,1) * (1,HW) broadcast multiply-add.
            acc = acc + w_col * x[b * cin + ci:b * cin + ci + 1, :]

        # ReLU; HW is a multiple of 128 -> unmasked lane-dense store.
        o_ref[b * cout:(b + 1) * cout, :] = jnp.maximum(acc, 0.0).astype(o_ref.dtype)
    # TODO(synk): residual / drop_path branch omitted -- has_residual is False for
    # the skip=False configuration implemented here.


def _pack_params(params, eps=1e-5):
    """Fold BN into the expert weights and pack all small params into one slab."""
    wr, br, we = params["wr"], params["br"], params["we"]          # (E,Cin), (E,), (E,Cout,Cin)
    e, cout, cin = we.shape
    scale = params["gamma"] / jnp.sqrt(params["var"] + eps)        # (Cout,)
    bias = params["beta"] - params["mean"] * scale                 # (Cout,)

    we_scaled = we * scale[None, :, None]                          # (E, Cout, Cin)
    # -> rows ci*Cout+co, lanes e (so the kernel needs no reshape/transpose).
    we_rows = jnp.transpose(we_scaled, (2, 1, 0)).reshape(cin * cout, e)

    rows = cin * cout + cin + 1 + cout
    packed = jnp.zeros((rows, e), jnp.float32)
    packed = packed.at[0:cin * cout, :].set(we_rows)
    packed = packed.at[cin * cout:cin * cout + cin, :].set(wr.T)   # (Cin, E)
    packed = packed.at[cin * cout + cin, :].set(br)
    packed = packed.at[cin * cout + cin + 1:, 0].set(bias)         # bias as a sublane column
    return packed


def conv_bn_act_pallas(x_nchw, params, *, batch_tile=None):
    """Fused ConvBnAct on NCHW input: (B, Cin, H, W) -> (B, Cout, H, W)."""
    b, cin, h, w = x_nchw.shape
    hw = h * w
    e, cout, cin2 = params["we"].shape
    assert cin2 == cin

    packed = _pack_params(params)                     # (Cin*Cout+Cin+1+Cout, E), one DMA
    x2 = x_nchw.reshape(b * cin, hw)                  # free reshape, no transpose

    # --- batch-tile gating: single shot for tiny problems; batch-parallel grid
    # for large ones (v7x has 2 TCs and only 64 MiB VMEM -> keep tiles modest). ---
    itemsize = jnp.dtype(x2.dtype).itemsize
    per_sample_bytes = (cin + cout) * hw * itemsize
    if batch_tile is None:
        vmem_budget = 2 << 20                          # per-tile x+out bytes (x2 for dbl-buffer)
        if b * per_sample_bytes <= vmem_budget:
            batch_tile = b
        else:
            batch_tile = max(1, vmem_budget // per_sample_bytes)
    batch_tile = int(min(batch_tile, b))

    def _tile_ok(bt):
        if bt == b:
            return True
        return b % bt == 0 and (bt * cin) % 8 == 0 and (bt * cout) % 8 == 0

    while batch_tile > 1 and not _tile_ok(batch_tile):
        batch_tile -= 1
    if not _tile_ok(batch_tile):
        batch_tile = b
    nb = b // batch_tile

    kernel = partial(_convbnact_kernel, cin=cin, cout=cout, nexp=e)

    cost = pl.CostEstimate(
        flops=int(2 * b * cin * cout * hw + 2 * b * (cin * e + e * cin * cout)),
        transcendentals=int(b * e),
        bytes_accessed=int((x2.size + b * cout * hw + packed.size) * itemsize),
    )

    out = pl.pallas_call(
        kernel,
        out_shape=jax.ShapeDtypeStruct((b * cout, hw), jnp.float32),
        grid=(nb,),
        in_specs=[
            pl.BlockSpec((batch_tile * cin, hw), lambda i: (i, 0)),
            pl.BlockSpec(packed.shape, lambda i: (0, 0)),      # same tiny slab every step
        ],
        out_specs=pl.BlockSpec((batch_tile * cout, hw), lambda i: (i, 0)),
        compiler_params=pltpu.CompilerParams(
            dimension_semantics=("parallel",),                 # v7x: shard tiles over 2 TCs
        ),
        cost_estimate=cost,
    )(x2, packed)

    return out.reshape(b, cout, h, w)                 # free reshape back to NCHW


def conv_bn_act_reference(x_nchw, params):
    """Pure-JAX reference of the PyTorch forward (inference BN)."""
    eps = 1e-5
    pooled = jnp.mean(x_nchw, axis=(2, 3))                            # (B, Cin)
    routing = jax.nn.sigmoid(pooled @ params["wr"].T + params["br"])  # (B, E)
    w = jnp.einsum("be,eoc->boc", routing, params["we"])              # (B, Cout, Cin)
    y = jnp.einsum("bchw,boc->bohw", x_nchw, w)                       # 1x1 conv
    scale = params["gamma"] / jnp.sqrt(params["var"] + eps)
    bias = params["beta"] - params["mean"] * scale
    y = y * scale[None, :, None, None] + bias[None, :, None, None]
    return jnp.maximum(y, 0.0)


if __name__ == "__main__":
    B, Cin, H, W = 2, 4, 16, 16
    Cout, E = 8, 4

    key = jax.random.PRNGKey(0)
    kx, k1, k2, k3, k4, k5 = jax.random.split(key, 6)

    x = jax.random.normal(kx, (B, Cin, H, W), dtype=jnp.float32)

    params = {
        # nn.Linear(in_chs, num_experts): weight (E, Cin), bias (E,)
        "wr": 0.2 * jax.random.normal(k1, (E, Cin), dtype=jnp.float32),
        "br": 0.1 * jax.random.normal(k2, (E,), dtype=jnp.float32),
        # CondConv2d expert weights: (E, Cout, Cin) for a 1x1 conv, bias=False
        "we": 0.3 * jax.random.normal(k3, (E, Cout, Cin), dtype=jnp.float32),
        # BatchNorm2d(out_chs) parameters / running stats
        "gamma": 1.0 + 0.1 * jax.random.normal(k4, (Cout,), dtype=jnp.float32),
        "beta": 0.05 * jax.random.normal(k5, (Cout,), dtype=jnp.float32),
        "mean": jnp.linspace(-0.1, 0.1, Cout, dtype=jnp.float32),
        "var": jnp.linspace(0.9, 1.1, Cout, dtype=jnp.float32),
    }

    out = conv_bn_act_pallas(x, params)
    out = jax.block_until_ready(out)

    ref = conv_bn_act_reference(x, params)
    assert out.shape == (B, Cout, H, W), out.shape
    assert jnp.allclose(out, ref, rtol=1e-3, atol=1e-3), "mismatch vs reference"

    print("KERNEL_OK")
</pallas_src>

<mosaic_0001>
module attributes {stable_mosaic.version = 11 : i64} {
  func.func @_convbnact_kernel(%arg0: i32, %arg1: memref<8x256xf32, #tpu.memory_space<vmem>>, %arg2: memref<45x4xf32, #tpu.memory_space<vmem>>, %arg3: memref<16x256xf32, #tpu.memory_space<vmem>>) attributes {dimension_semantics = [#tpu.dimension_semantics<parallel>], iteration_bounds = array<i64: 1>, scalar_prefetch = 0 : i64, scratch_operands = 0 : i64, tpu.core_type = #tpu.core_type<tc>, window_params = [{transform_indices = @transform_0, window_bounds = array<i64: 8, 256>}, {pipeline_mode = #tpu.pipeline_mode<synchronous>, transform_indices = @transform_1, window_bounds = array<i64: 45, 4>}, {transform_indices = @transform_2, window_bounds = array<i64: 16, 256>}]} {
    %c0 = arith.constant 0 : index
    %c0_0 = arith.constant 0 : index
    %0 = vector.load %arg2[%c0, %c0_0] : memref<45x4xf32, #tpu.memory_space<vmem>>, vector<45x4xf32>
    %1 = vector.extract_strided_slice %0 {offsets = [0, 0], sizes = [32, 4], strides = [1, 1]} : vector<45x4xf32> to vector<32x4xf32>
    %2 = vector.extract_strided_slice %0 {offsets = [32, 0], sizes = [4, 4], strides = [1, 1]} : vector<45x4xf32> to vector<4x4xf32>
    %3 = vector.extract_strided_slice %0 {offsets = [36, 0], sizes = [1, 4], strides = [1, 1]} : vector<45x4xf32> to vector<1x4xf32>
    %4 = vector.extract_strided_slice %0 {offsets = [37, 0], sizes = [8, 1], strides = [1, 1]} : vector<45x4xf32> to vector<8x1xf32>
    %c0_1 = arith.constant 0 : index
    %c0_2 = arith.constant 0 : index
    %5 = vector.load %arg1[%c0_1, %c0_2] : memref<8x256xf32, #tpu.memory_space<vmem>>, vector<8x256xf32>
    %cst = arith.constant dense<0.000000e+00> : vector<8xf32>
    %6 = vector.multi_reduction <add>, %5, %cst [1] : vector<8x256xf32> to vector<8xf32>
    %7 = vector.shape_cast %6 : vector<8xf32> to vector<8x1xf32>
    %cst_3 = arith.constant 2.560000e+02 : f32
    %8 = vector.broadcast %cst_3 : f32 to vector<8x1xf32>
    %9 = arith.divf %7, %8 : vector<8x1xf32>
    %10 = vector.shape_cast %4 : vector<8x1xf32> to vector<8x1xf32>
    %11 = vector.broadcast %10 : vector<8x1xf32> to vector<8x256xf32>
    %12 = vector.extract_strided_slice %9 {offsets = [0, 0], sizes = [4, 1], strides = [1, 1]} : vector<8x1xf32> to vector<4x1xf32>
    %13 = vector.broadcast %12 : vector<4x1xf32> to vector<4x4xf32>
    %14 = arith.mulf %13, %2 : vector<4x4xf32>
    %cst_4 = arith.constant dense<0.000000e+00> : vector<4xf32>
    %15 = vector.multi_reduction <add>, %14, %cst_4 [0] : vector<4x4xf32> to vector<4xf32>
    %16 = vector.shape_cast %15 : vector<4xf32> to vector<1x4xf32>
    %17 = arith.addf %16, %3 : vector<1x4xf32>
    %18 = arith.negf %17 : vector<1x4xf32>
    %19 = math.exp %18 : vector<1x4xf32>
    %cst_5 = arith.constant 1.000000e+00 : f32
    %20 = vector.broadcast %cst_5 : f32 to vector<1x4xf32>
    %21 = arith.addf %20, %19 : vector<1x4xf32>
    %22 = arith.divf %20, %21 : vector<1x4xf32>
    %23 = vector.extract_strided_slice %1 {offsets = [0, 0], sizes = [8, 4], strides = [1, 1]} : vector<32x4xf32> to vector<8x4xf32>
    %24 = vector.broadcast %22 : vector<1x4xf32> to vector<8x4xf32>
    %25 = arith.mulf %23, %24 : vector<8x4xf32>
    %cst_6 = arith.constant dense<0.000000e+00> : vector<8xf32>
    %26 = vector.multi_reduction <add>, %25, %cst_6 [1] : vector<8x4xf32> to vector<8xf32>
    %27 = vector.shape_cast %26 : vector<8xf32> to vector<8x1xf32>
    %28 = vector.extract_strided_slice %5 {offsets = [0, 0], sizes = [1, 256], strides = [1, 1]} : vector<8x256xf32> to vector<1x256xf32>
    %29 = vector.broadcast %27 : vector<8x1xf32> to vector<8x256xf32>
    %30 = vector.broadcast %28 : vector<1x256xf32> to vector<8x256xf32>
    %31 = arith.mulf %29, %30 : vector<8x256xf32>
    %32 = arith.addf %11, %31 : vector<8x256xf32>
    %33 = vector.extract_strided_slice %1 {offsets = [8, 0], sizes = [8, 4], strides = [1, 1]} : vector<32x4xf32> to vector<8x4xf32>
    %34 = vector.broadcast %22 : vector<1x4xf32> to vector<8x4xf32>
    %35 = arith.mulf %33, %34 : vector<8x4xf32>
    %cst_7 = arith.constant dense<0.000000e+00> : vector<8xf32>
    %36 = vector.multi_reduction <add>, %35, %cst_7 [1] : vector<8x4xf32> to vector<8xf32>
    %37 = vector.shape_cast %36 : vector<8xf32> to vector<8x1xf32>
    %38 = vector.extract_strided_slice %5 {offsets = [1, 0], sizes = [1, 256], strides = [1, 1]} : vector<8x256xf32> to vector<1x256xf32>
    %39 = vector.broadcast %37 : vector<8x1xf32> to vector<8x256xf32>
    %40 = vector.broadcast %38 : vector<1x256xf32> to vector<8x256xf32>
    %41 = arith.mulf %39, %40 : vector<8x256xf32>
    %42 = arith.addf %32, %41 : vector<8x256xf32>
    %43 = vector.extract_strided_slice %1 {offsets = [16, 0], sizes = [8, 4], strides = [1, 1]} : vector<32x4xf32> to vector<8x4xf32>
    %44 = vector.broadcast %22 : vector<1x4xf32> to vector<8x4xf32>
    %45 = arith.mulf %43, %44 : vector<8x4xf32>
    %cst_8 = arith.constant dense<0.000000e+00> : vector<8xf32>
    %46 = vector.multi_reduction <add>, %45, %cst_8 [1] : vector<8x4xf32> to vector<8xf32>
    %47 = vector.shape_cast %46 : vector<8xf32> to vector<8x1xf32>
    %48 = vector.extract_strided_slice %5 {offsets = [2, 0], sizes = [1, 256], strides = [1, 1]} : vector<8x256xf32> to vector<1x256xf32>
    %49 = vector.broadcast %47 : vector<8x1xf32> to vector<8x256xf32>
    %50 = vector.broadcast %48 : vector<1x256xf32> to vector<8x256xf32>
    %51 = arith.mulf %49, %50 : vector<8x256xf32>
    %52 = arith.addf %42, %51 : vector<8x256xf32>
    %53 = vector.extract_strided_slice %1 {offsets = [24, 0], sizes = [8, 4], strides = [1, 1]} : vector<32x4xf32> to vector<8x4xf32>
    %54 = vector.broadcast %22 : vector<1x4xf32> to vector<8x4xf32>
    %55 = arith.mulf %53, %54 : vector<8x4xf32>
    %cst_9 = arith.constant dense<0.000000e+00> : vector<8xf32>
    %56 = vector.multi_reduction <add>, %55, %cst_9 [1] : vector<8x4xf32> to vector<8xf32>
    %57 = vector.shape_cast %56 : vector<8xf32> to vector<8x1xf32>
    %58 = vector.extract_strided_slice %5 {offsets = [3, 0], sizes = [1, 256], strides = [1, 1]} : vector<8x256xf32> to vector<1x256xf32>
    %59 = vector.broadcast %57 : vector<8x1xf32> to vector<8x256xf32>
    %60 = vector.broadcast %58 : vector<1x256xf32> to vector<8x256xf32>
    %61 = arith.mulf %59, %60 : vector<8x256xf32>
    %62 = arith.addf %52, %61 : vector<8x256xf32>
    %cst_10 = arith.constant 0.000000e+00 : f32
    %63 = vector.broadcast %cst_10 : f32 to vector<8x256xf32>
    %64 = arith.maximumf %62, %63 : vector<8x256xf32>
    %c0_11 = arith.constant 0 : index
    %c0_12 = arith.constant 0 : index
    %65 = vector.load %arg3[%c0_11, %c0_12] : memref<16x256xf32, #tpu.memory_space<vmem>>, vector<8x256xf32>
    tpu.vector_store %arg3[%c0_11, %c0_12], %64 {strides = array<i32>} : memref<16x256xf32, #tpu.memory_space<vmem>>, vector<8x256xf32>,
    %66 = vector.extract_strided_slice %9 {offsets = [4, 0], sizes = [4, 1], strides = [1, 1]} : vector<8x1xf32> to vector<4x1xf32>
    %67 = vector.broadcast %66 : vector<4x1xf32> to vector<4x4xf32>
    %68 = arith.mulf %67, %2 : vector<4x4xf32>
    %cst_13 = arith.constant dense<0.000000e+00> : vector<4xf32>
    %69 = vector.multi_reduction <add>, %68, %cst_13 [0] : vector<4x4xf32> to vector<4xf32>
    %70 = vector.shape_cast %69 : vector<4xf32> to vector<1x4xf32>
    %71 = arith.addf %70, %3 : vector<1x4xf32>
    %72 = arith.negf %71 : vector<1x4xf32>
    %73 = math.exp %72 : vector<1x4xf32>
    %cst_14 = arith.constant 1.000000e+00 : f32
    %74 = vector.broadcast %cst_14 : f32 to vector<1x4xf32>
    %75 = arith.addf %74, %73 : vector<1x4xf32>
    %76 = arith.divf %74, %75 : vector<1x4xf32>
    %77 = vector.extract_strided_slice %1 {offsets = [0, 0], sizes = [8, 4], strides = [1, 1]} : vector<32x4xf32> to vector<8x4xf32>
    %78 = vector.broadcast %76 : vector<1x4xf32> to vector<8x4xf32>
    %79 = arith.mulf %77, %78 : vector<8x4xf32>
    %cst_15 = arith.constant dense<0.000000e+00> : vector<8xf32>
    %80 = vector.multi_reduction <add>, %79, %cst_15 [1] : vector<8x4xf32> to vector<8xf32>
    %81 = vector.shape_cast %80 : vector<8xf32> to vector<8x1xf32>
    %82 = vector.extract_strided_slice %5 {offsets = [4, 0], sizes = [1, 256], strides = [1, 1]} : vector<8x256xf32> to vector<1x256xf32>
    %83 = vector.broadcast %81 : vector<8x1xf32> to vector<8x256xf32>
    %84 = vector.broadcast %82 : vector<1x256xf32> to vector<8x256xf32>
    %85 = arith.mulf %83, %84 : vector<8x256xf32>
    %86 = arith.addf %11, %85 : vector<8x256xf32>
    %87 = vector.extract_strided_slice %1 {offsets = [8, 0], sizes = [8, 4], strides = [1, 1]} : vector<32x4xf32> to vector<8x4xf32>
    %88 = vector.broadcast %76 : vector<1x4xf32> to vector<8x4xf32>
    %89 = arith.mulf %87, %88 : vector<8x4xf32>
    %cst_16 = arith.constant dense<0.000000e+00> : vector<8xf32>
    %90 = vector.multi_reduction <add>, %89, %cst_16 [1] : vector<8x4xf32> to vector<8xf32>
    %91 = vector.shape_cast %90 : vector<8xf32> to vector<8x1xf32>
    %92 = vector.extract_strided_slice %5 {offsets = [5, 0], sizes = [1, 256], strides = [1, 1]} : vector<8x256xf32> to vector<1x256xf32>
    %93 = vector.broadcast %91 : vector<8x1xf32> to vector<8x256xf32>
    %94 = vector.broadcast %92 : vector<1x256xf32> to vector<8x256xf32>
    %95 = arith.mulf %93, %94 : vector<8x256xf32>
    %96 = arith.addf %86, %95 : vector<8x256xf32>
    %97 = vector.extract_strided_slice %1 {offsets = [16, 0], sizes = [8, 4], strides = [1, 1]} : vector<32x4xf32> to vector<8x4xf32>
    %98 = vector.broadcast %76 : vector<1x4xf32> to vector<8x4xf32>
    %99 = arith.mulf %97, %98 : vector<8x4xf32>
    %cst_17 = arith.constant dense<0.000000e+00> : vector<8xf32>
    %100 = vector.multi_reduction <add>, %99, %cst_17 [1] : vector<8x4xf32> to vector<8xf32>
    %101 = vector.shape_cast %100 : vector<8xf32> to vector<8x1xf32>
    %102 = vector.extract_strided_slice %5 {offsets = [6, 0], sizes = [1, 256], strides = [1, 1]} : vector<8x256xf32> to vector<1x256xf32>
    %103 = vector.broadcast %101 : vector<8x1xf32> to vector<8x256xf32>
    %104 = vector.broadcast %102 : vector<1x256xf32> to vector<8x256xf32>
    %105 = arith.mulf %103, %104 : vector<8x256xf32>
    %106 = arith.addf %96, %105 : vector<8x256xf32>
    %107 = vector.extract_strided_slice %1 {offsets = [24, 0], sizes = [8, 4], strides = [1, 1]} : vector<32x4xf32> to vector<8x4xf32>
    %108 = vector.broadcast %76 : vector<1x4xf32> to vector<8x4xf32>
    %109 = arith.mulf %107, %108 : vector<8x4xf32>
    %cst_18 = arith.constant dense<0.000000e+00> : vector<8xf32>
    %110 = vector.multi_reduction <add>, %109, %cst_18 [1] : vector<8x4xf32> to vector<8xf32>
    %111 = vector.shape_cast %110 : vector<8xf32> to vector<8x1xf32>
    %112 = vector.extract_strided_slice %5 {offsets = [7, 0], sizes = [1, 256], strides = [1, 1]} : vector<8x256xf32> to vector<1x256xf32>
    %113 = vector.broadcast %111 : vector<8x1xf32> to vector<8x256xf32>
    %114 = vector.broadcast %112 : vector<1x256xf32> to vector<8x256xf32>
    %115 = arith.mulf %113, %114 : vector<8x256xf32>
    %116 = arith.addf %106, %115 : vector<8x256xf32>
    %cst_19 = arith.constant 0.000000e+00 : f32
    %117 = vector.broadcast %cst_19 : f32 to vector<8x256xf32>
    %118 = arith.maximumf %116, %117 : vector<8x256xf32>
    %c8 = arith.constant 8 : index
    %c0_20 = arith.constant 0 : index
    %119 = vector.load %arg3[%c8, %c0_20] : memref<16x256xf32, #tpu.memory_space<vmem>>, vector<8x256xf32>
    tpu.vector_store %arg3[%c8, %c0_20], %118 {strides = array<i32>} : memref<16x256xf32, #tpu.memory_space<vmem>>, vector<8x256xf32>,
    return
  }
  func.func @transform_0(%arg0: i32) -> (i32, i32) {
    %c0_i32 = arith.constant 0 : i32
    %c0_i32_0 = arith.constant 0 : i32
    return %arg0, %c0_i32 : i32, i32
  }
  func.func @transform_1(%arg0: i32) -> (i32, i32) {
    %c0_i32 = arith.constant 0 : i32
    %c0_i32_0 = arith.constant 0 : i32
    %c0_i32_1 = arith.constant 0 : i32
    return %c0_i32, %c0_i32_0 : i32, i32
  }
  func.func @transform_2(%arg0: i32) -> (i32, i32) {
    %c0_i32 = arith.constant 0 : i32
    %c0_i32_0 = arith.constant 0 : i32
    return %arg0, %c0_i32 : i32, i32
  }
}

</mosaic_0001>

<llo_original>
// kernel: tpu_custom_call.1
$region0: #{tpu_custom_call.1}
  #allocation0 [shape = 'u32[]', space=smem, size = 0x4, offset = 0x4, fixed_abs, tag = 'smem constant byte address 0x4 - core index']
  #allocation1 [shape = 'u32[144,128]{1,0:T(1,128)}', space=vmem, size = 0x12000, scoped, tag = 'internal scratch']
  %s0 = inlined_call_operand.vmem [shape: f32[8,256], index: 0, kind: input, shape index: {}]
  %s1 = inlined_call_operand.vmem [shape: f32[45,4], index: 1, kind: input, shape index: {}]
  %s2 = inlined_call_operand.hbm [shape: f32[16,256], index: 2, kind: output, shape index: {}]
  %s3 = sld [smem:[#allocation0]]
  $region18: #{tpu_custom_call.1} parent=0
    _
  %s5 = ssub.s32 1, %s3
  %s6 = scalar_select 0, %s5, %s3
  $region1: #{tpu_custom_call.1} parent=0
    #allocation2 [shape = 'u8[16384]{0}', space=vmem, size = 0x4000, scoped, tag = 'output window, operand 0, single buffered']
    #allocation3 [shape = 's32[1]{0}', space=sflag, size = 0x4, scoped, tag = 'scoped memory for tpu_custom_call.1']
    %7 = vsyncpa [#allocation3], 0
    // Predicated region
    $region2: #{tpu_custom_call.1} parent=1 // pred_check
      _
    $region3: #{tpu_custom_call.1} parent=1 // pred_check_branch
      %9 = sbr.rel (0) target = $region5
    $region4: #{tpu_custom_call.1} parent=1 // pred_region
      _
    $region5: #{tpu_custom_call.1} parent=1 // pred_fallthru
      _
    // Predicated region
    $region6: #{tpu_custom_call.1} parent=1 // pred_check
      _
    $region7: #{tpu_custom_call.1} parent=1 // pred_check_branch
      %11 = sbr.rel (0) target = $region9
    $region8: #{tpu_custom_call.1} parent=1 // pred_region
      _
    $region9: #{tpu_custom_call.1} parent=1 // pred_fallthru
      _
    %v12 = vld [vmem:[%s1] sm:$0xff]
    %v13 = vld [vmem:[%s1 + $0x8] sm:$0xff]
    %v14 = vld [vmem:[%s1 + $0x10] sm:$0xff]
    %v15 = vld [vmem:[%s1 + $0x18] sm:$0xff]
    %v16 = vld [vmem:[%s1 + $0x20] sm:$0xff]
    %v17 = vld [vmem:[%s1 + $0x28] sm:$0x1f]
    %v18 = vld [vmem:[%s0] sm:$0xff]
    %v19 = vld [vmem:[%s0 + $0x8] sm:$0xff]
    %v20 = vadd.f32 %v18, %v19
    %21 = vadd.xlane.f32.xlu0 %v20
    %v22 = vpop.xlane.xlu0 %21
    %v23 = vrcp.pop 256.0
    %v24 = vmul.f32 %v22, %v23
    %26 = vset.pattern.permute.xlu0 0
    %27 = vperm.xlu0 %26, %v16
    %v28 = vpop.permute.xlu0 %27
    %31 = vset.pattern.permute.xlu0 0
    %32 = vperm.xlu0 %31, %v17
    %v33 = vpop.permute.xlu0 %32
    %v35 = vmul.f32 %v24, %v16
    %vm36 = vcmask 27648
    %v37 = vsel %vm36, %v35, 0.0
    %v38 = vrot.slane %v37, 4
    %v39 = vadd.f32 %v37, %v38
    %v40 = vrot.slane %v39, 2
    %v41 = vadd.f32 %v39, %v40
    %v42 = vrot.slane %v41, 1
    %v43 = vadd.f32 %v41, %v42
    %v44 = vadd.f32 %v43, %v16
    %v45 = vxor.u32 %v44, 2147483648
    %v46 = vmul.f32 %v45, 1.442695
    %v47 = vpow.pop %v46
    %v48 = vadd.f32 %v47, 1.0
    %v49 = vrcp.pop %v48
    %v50 = vmul.f32 1.0, %v49
    %v51 = vlaneseq
    %v52 = vshrl.u32 %v51, 7
    %v53 = vsub.s32 4, %v52
    %v54 = vrot.slane %v50, %v53
    %v55 = vmul.f32 %v12, %v54
    %vm56 = vcmask 31744
    %v57 = vsel %vm56, %v55, 0.0
    %58 = vadd.xlane.f32.xlu0 %v57
    %v59 = vpop.xlane.xlu0 %58
    %v60 = vlaneseq
    %v61 = vshrl.u32 %v60, 7
    %v62 = vsub.s32 0, %v61
    %v63 = vrot.slane %v18, %v62
    %v64 = vlaneseq
    %v65 = vshrl.u32 %v64, 7
    %v66 = vsub.s32 0, %v65
    %v67 = vrot.slane %v19, %v66
    %v68 = vmul.f32 %v59, %v63
    %v69 = vmul.f32 %v59, %v67
    %v72 = vrot.slane %v68, 3
    %v73 = vrot.slane %v69, 3
    %v76 = vadd.f32 %v28, %v72
    %v77 = vadd.f32 %v28, %v73
    %v78 = vadd.f32 %v33, %v72
    %v79 = vadd.f32 %v33, %v73
    %v80 = vmul.f32 %v13, %v54
    %v81 = vsel %vm56, %v80, 0.0
    %82 = vadd.xlane.f32.xlu0 %v81
    %v83 = vpop.xlane.xlu0 %82
    %v84 = vlaneseq
    %v85 = vshrl.u32 %v84, 7
    %v86 = vsub.s32 1, %v85
    %v87 = vrot.slane %v18, %v86
    %v88 = vlaneseq
    %v89 = vshrl.u32 %v88, 7
    %v90 = vsub.s32 1, %v89
    %v91 = vrot.slane %v19, %v90
    %v92 = vmul.f32 %v83, %v87
    %v93 = vmul.f32 %v83, %v91
    %v96 = vrot.slane %v92, 3
    %v97 = vrot.slane %v93, 3
    %v100 = vadd.f32 %v76, %v96
    %v101 = vadd.f32 %v77, %v97
    %v102 = vadd.f32 %v78, %v96
    %v103 = vadd.f32 %v79, %v97
    %v104 = vmul.f32 %v14, %v54
    %v105 = vsel %vm56, %v104, 0.0
    %106 = vadd.xlane.f32.xlu0 %v105
    %v107 = vpop.xlane.xlu0 %106
    %v108 = vlaneseq
    %v109 = vshrl.u32 %v108, 7
    %v110 = vsub.s32 2, %v109
    %v111 = vrot.slane %v18, %v110
    %v112 = vlaneseq
    %v113 = vshrl.u32 %v112, 7
    %v114 = vsub.s32 2, %v113
    %v115 = vrot.slane %v19, %v114
    %v116 = vmul.f32 %v107, %v111
    %v117 = vmul.f32 %v107, %v115
    %v120 = vrot.slane %v116, 3
    %v121 = vrot.slane %v117, 3
    %v124 = vadd.f32 %v100, %v120
    %v125 = vadd.f32 %v101, %v121
    %v126 = vadd.f32 %v102, %v120
    %v127 = vadd.f32 %v103, %v121
    %v128 = vmul.f32 %v15, %v54
    %v129 = vsel %vm56, %v128, 0.0
    %130 = vadd.xlane.f32.xlu0 %v129
    %v131 = vpop.xlane.xlu0 %130
    %v132 = vlaneseq
    %v133 = vshrl.u32 %v132, 7
    %v134 = vsub.s32 3, %v133
    %v135 = vrot.slane %v18, %v134
    %v136 = vlaneseq
    %v137 = vshrl.u32 %v136, 7
    %v138 = vsub.s32 3, %v137
    %v139 = vrot.slane %v19, %v138
    %v140 = vmul.f32 %v131, %v135
    %v141 = vmul.f32 %v131, %v139
    %v144 = vrot.slane %v140, 3
    %v145 = vrot.slane %v141, 3
    %v148 = vadd.f32 %v124, %v144
    %v149 = vadd.f32 %v125, %v145
    %v150 = vadd.f32 %v126, %v144
    %v151 = vadd.f32 %v127, %v145
    %v152 = vmax.f32 %v148, 0.0
    %v153 = vmax.f32 %v149, 0.0
    %v154 = vmax.f32 %v150, 0.0
    %v155 = vmax.f32 %v151, 0.0
    %vm160 = vcmask 1042432
    %v161 = vrot.slane %v152, 5
    %v162 = vrot.slane %v154, 5
    %v163 = vsel %vm160, %v161, %v162
    %v164 = vrot.slane %v153, 5
    %v165 = vrot.slane %v155, 5
    %v166 = vsel %vm160, %v164, %v165
    %169 = vst [vmem:[#allocation2] sm:$0xff] %v163
    %170 = vst [vmem:[#allocation2 + $0x8] sm:$0xff] %v166
    %v171 = vrot.slane %v16, 4
    %v173 = vmul.f32 %v24, %v171
    %v175 = vrot.slane %v173, 4
    %v177 = vsel %vm36, %v175, 0.0
    %v178 = vrot.slane %v177, 4
    %v179 = vadd.f32 %v177, %v178
    %v180 = vrot.slane %v179, 2
    %v181 = vadd.f32 %v179, %v180
    %v182 = vrot.slane %v181, 1
    %v183 = vadd.f32 %v181, %v182
    %v184 = vadd.f32 %v183, %v16
    %v185 = vxor.u32 %v184, 2147483648
    %v186 = vmul.f32 %v185, 1.442695
    %v187 = vpow.pop %v186
    %v188 = vadd.f32 %v187, 1.0
    %v189 = vrcp.pop %v188
    %v190 = vmul.f32 1.0, %v189
    %v191 = vlaneseq
    %v192 = vshrl.u32 %v191, 7
    %v193 = vsub.s32 4, %v192
    %v194 = vrot.slane %v190, %v193
    %v195 = vmul.f32 %v12, %v194
    %v196 = vsel %vm56, %v195, 0.0
    %197 = vadd.xlane.f32.xlu0 %v196
    %v198 = vpop.xlane.xlu0 %197
    %v199 = vlaneseq
    %v200 = vshrl.u32 %v199, 7
    %v201 = vsub.s32 4, %v200
    %v202 = vrot.slane %v18, %v201
    %v203 = vlaneseq
    %v204 = vshrl.u32 %v203, 7
    %v205 = vsub.s32 4, %v204
    %v206 = vrot.slane %v19, %v205
    %v207 = vmul.f32 %v198, %v202
    %v208 = vmul.f32 %v198, %v206
    %v211 = vrot.slane %v207, 3
    %v212 = vrot.slane %v208, 3
    %v215 = vadd.f32 %v28, %v211
    %v216 = vadd.f32 %v28, %v212
    %v217 = vadd.f32 %v33, %v211
    %v218 = vadd.f32 %v33, %v212
    %v219 = vmul.f32 %v13, %v194
    %v220 = vsel %vm56, %v219, 0.0
    %221 = vadd.xlane.f32.xlu0 %v220
    %v222 = vpop.xlane.xlu0 %221
    %v223 = vlaneseq
    %v224 = vshrl.u32 %v223, 7
    %v225 = vsub.s32 5, %v224
    %v226 = vrot.slane %v18, %v225
    %v227 = vlaneseq
    %v228 = vshrl.u32 %v227, 7
    %v229 = vsub.s32 5, %v228
    %v230 = vrot.slane %v19, %v229
    %v231 = vmul.f32 %v222, %v226
    %v232 = vmul.f32 %v222, %v230
    %v235 = vrot.slane %v231, 3
    %v236 = vrot.slane %v232, 3
    %v239 = vadd.f32 %v215, %v235
    %v240 = vadd.f32 %v216, %v236
    %v241 = vadd.f32 %v217, %v235
    %v242 = vadd.f32 %v218, %v236
    %v243 = vmul.f32 %v14, %v194
    %v244 = vsel %vm56, %v243, 0.0
    %245 = vadd.xlane.f32.xlu0 %v244
    %v246 = vpop.xlane.xlu0 %245
    %v247 = vlaneseq
    %v248 = vshrl.u32 %v247, 7
    %v249 = vsub.s32 6, %v248
    %v250 = vrot.slane %v18, %v249
    %v251 = vlaneseq
    %v252 = vshrl.u32 %v251, 7
    %v253 = vsub.s32 6, %v252
    %v254 = vrot.slane %v19, %v253
    %v255 = vmul.f32 %v246, %v250
    %v256 = vmul.f32 %v246, %v254
    %v259 = vrot.slane %v255, 3
    %v260 = vrot.slane %v256, 3
    %v263 = vadd.f32 %v239, %v259
    %v264 = vadd.f32 %v240, %v260
    %v265 = vadd.f32 %v241, %v259
    %v266 = vadd.f32 %v242, %v260
    %v267 = vmul.f32 %v15, %v194
    %v268 = vsel %vm56, %v267, 0.0
    %269 = vadd.xlane.f32.xlu0 %v268
    %v270 = vpop.xlane.xlu0 %269
    %v271 = vlaneseq
    %v272 = vshrl.u32 %v271, 7
    %v273 = vsub.s32 7, %v272
    %v274 = vrot.slane %v18, %v273
    %v275 = vlaneseq
    %v276 = vshrl.u32 %v275, 7
    %v277 = vsub.s32 7, %v276
    %v278 = vrot.slane %v19, %v277
    %v279 = vmul.f32 %v270, %v274
    %v280 = vmul.f32 %v270, %v278
    %v283 = vrot.slane %v279, 3
    %v284 = vrot.slane %v280, 3
    %v287 = vadd.f32 %v263, %v283
    %v288 = vadd.f32 %v264, %v284
    %v289 = vadd.f32 %v265, %v283
    %v290 = vadd.f32 %v266, %v284
    %v291 = vmax.f32 %v287, 0.0
    %v292 = vmax.f32 %v288, 0.0
    %v293 = vmax.f32 %v289, 0.0
    %v294 = vmax.f32 %v290, 0.0
    %v299 = vrot.slane %v291, 5
    %v300 = vrot.slane %v293, 5
    %v301 = vsel %vm160, %v299, %v300
    %v302 = vrot.slane %v292, 5
    %v303 = vrot.slane %v294, 5
    %v304 = vsel %vm160, %v302, %v303
    %307 = vst [vmem:[#allocation2 + $0x10] sm:$0xff] %v301
    %308 = vst [vmem:[#allocation2 + $0x18] sm:$0xff] %v304
    // Predicated region
    $region10: #{tpu_custom_call.1} parent=1 // pred_check
      _
    $region11: #{tpu_custom_call.1} parent=1 // pred_check_branch
      %310 = sbr.rel (0) target = $region13
    $region12: #{tpu_custom_call.1} parent=1 // pred_region
      %s312 = ssub.s32 512, 512
      %313 = vsyncadd [#allocation3], %s312
      %s314 = sshll.u32 [#allocation2], 4
      %s315 = int_to_ptr.vmem [resolvable:$true] %s314
      %320 = dma.vmem_to_hbm [thread:$0]  %s315, 512, %s2, [#allocation3], 256, 256, 16
    $region13: #{tpu_custom_call.1} parent=1 // pred_fallthru
      _
    // Predicated region
    $region14: #{tpu_custom_call.1} parent=1 // pred_check
      _
    $region15: #{tpu_custom_call.1} parent=1 // pred_check_branch
      %322 = sbr.rel (0) target = $region17
    $region16: #{tpu_custom_call.1} parent=1 // pred_region
      %323 = dma.done [#allocation3], 512
    $region17: #{tpu_custom_call.1} parent=1 // pred_fallthru
      _
    %324 = vsyncpa [#allocation3], 1

</llo_original>
